<compile_context>
chip_gen: v7x
topology: tpu7x:2x2x1
jax: 0.10.0
libtpu: 0.0.40
codegen_flags: <defaults>
</compile_context>

<pallas_src>
import functools

import jax
import jax.numpy as jnp
from jax.experimental import pallas as pl
from jax.experimental.pallas import tpu as pltpu


def _cdiv(a: int, b: int) -> int:
    return -(-a // b)


def _round_up(x: int, m: int) -> int:
    return _cdiv(x, m) * m


@functools.lru_cache(maxsize=None)
def _physical_vmem_bytes() -> int:
    try:
        return int(pltpu.get_tpu_info().vmem_capacity_bytes)
    except Exception:
        # Conservative fallback: assume a v7x-class 64 MiB per-core VMEM.
        return 64 * 1024 * 1024


def _tile_caps(compute_itemsize: int, big_vmem: bool):
    """(TM, TN, TK) caps sized for the chip's VMEM budget."""
    if compute_itemsize <= 2:          # bf16 compute
        return (1024, 1024, 2048) if big_vmem else (1024, 1024, 1024)
    return (1024, 1024, 1024) if big_vmem else (512, 512, 1024)   # f32 compute


def _balanced_tile(dim: int, cap: int, align: int) -> int:
    """Largest tile <= cap such that padding never exceeds one align granule."""
    nblocks = _cdiv(dim, cap)
    return min(cap, _round_up(_cdiv(dim, nblocks), align))


# ---------------------------------------------------------------------------
# Kernels. Weight arrives pre-transposed: wt_ref block is (tk, tn).
# ---------------------------------------------------------------------------

def _fa_kernel_bias_f32out(x_ref, wt_ref, b_ref, o_ref):
    # f32 output: accumulate directly into the VMEM-resident output block.
    k = pl.program_id(2)

    @pl.when(k == 0)
    def _():
        o_ref[...] = jnp.broadcast_to(b_ref[...], o_ref.shape)

    o_ref[...] += jnp.dot(x_ref[...], wt_ref[...],
                          preferred_element_type=jnp.float32)


def _fa_kernel_nobias_f32out(x_ref, wt_ref, o_ref):
    k = pl.program_id(2)

    @pl.when(k == 0)
    def _():
        o_ref[...] = jnp.zeros_like(o_ref)

    o_ref[...] += jnp.dot(x_ref[...], wt_ref[...],
                          preferred_element_type=jnp.float32)


def _fa_kernel_bias_acc(x_ref, wt_ref, b_ref, o_ref, acc_ref):
    # Reduced-precision output: keep an f32 scratch accumulator.
    k = pl.program_id(2)

    @pl.when(k == 0)
    def _():
        acc_ref[...] = jnp.zeros_like(acc_ref)

    acc_ref[...] += jnp.dot(x_ref[...], wt_ref[...],
                            preferred_element_type=jnp.float32)

    @pl.when(k == pl.num_programs(2) - 1)
    def _():
        o_ref[...] = (acc_ref[...] + b_ref[...]).astype(o_ref.dtype)


def _fa_kernel_nobias_acc(x_ref, wt_ref, o_ref, acc_ref):
    k = pl.program_id(2)

    @pl.when(k == 0)
    def _():
        acc_ref[...] = jnp.zeros_like(acc_ref)

    acc_ref[...] += jnp.dot(x_ref[...], wt_ref[...],
                            preferred_element_type=jnp.float32)

    @pl.when(k == pl.num_programs(2) - 1)
    def _():
        o_ref[...] = acc_ref[...].astype(o_ref.dtype)


# ---------------------------------------------------------------------------
# Wrapper
# ---------------------------------------------------------------------------

@functools.partial(jax.jit, static_argnames=("compute_dtype",))
def fa_linear_forward(x, weight, weight_fa, bias=None, *, compute_dtype=None):
    """Pallas implementation of FALinear.forward.

    x         : (B, in_features)
    weight    : (out_features, in_features)
    weight_fa : (out_features, in_features)  -- forward-unused (backward only)
    bias      : (out_features,) or None
    compute_dtype : e.g. jnp.bfloat16 for the MXU fast path (f32 accumulation)
    returns   : (B, out_features)
    """
    del weight_fa  # forward pass never touches the feedback weights

    B, K = x.shape
    N, K2 = weight.shape
    assert K == K2, "input_features mismatch"
    out_dtype = x.dtype
    out_is_f32 = jnp.dtype(out_dtype) == jnp.dtype(jnp.float32)

    # Optional reduced-precision matmul inputs (f32 accumulation kept).
    if compute_dtype is not None:
        x = x.astype(compute_dtype)
        weight = weight.astype(compute_dtype)
    compute_itemsize = jnp.dtype(x.dtype).itemsize

    # ---- generation-aware VMEM budget & tile plan ------------------------
    phys_vmem = _physical_vmem_bytes()
    big_vmem = phys_vmem >= 100 * 1024 * 1024       # v5e/v6e: 128 MiB physical
    vmem_limit = (96 * 1024 * 1024 if big_vmem
                  else min(48 * 1024 * 1024, phys_vmem * 3 // 4))

    TM_CAP, TN_CAP, TK_CAP = _tile_caps(compute_itemsize, big_vmem)
    m_align = 16 if compute_itemsize <= 2 else 8
    k_align = 256 if compute_itemsize <= 2 else 128

    tm = _balanced_tile(B, TM_CAP, m_align)
    tn = _balanced_tile(N, TN_CAP, 128)             # lane-dense output tiles
    tk = _balanced_tile(K, TK_CAP, k_align)

    # v7x-class chips (64 MiB VMEM, 2 TensorCores): keep a parallel axis >= 2
    # blocks so the second core doesn't idle.
    if (not big_vmem) and _cdiv(B, tm) == 1 and _cdiv(N, tn) == 1 and N >= 256:
        tn = _round_up(_cdiv(N, 2), 128)

    Mp, Np, Kp = _round_up(B, tm), _round_up(N, tn), _round_up(K, tk)
    grid = (Mp // tm, Np // tn, Kp // tk)
    gm, gn, _ = grid

    # ---- operand prep -----------------------------------------------------
    # Pre-transpose the weight once to (K, N): the kernel's RHS contracting
    # dim lands on the sublane axis, so Mosaic emits no per-tile transposes.
    wT = weight.T
    xp = x if (Mp == B and Kp == K) else jnp.pad(x, ((0, Mp - B), (0, Kp - K)))
    wTp = wT if (Kp == K and Np == N) else jnp.pad(
        wT, ((0, Kp - K), (0, Np - N)))

    out_itemsize = jnp.dtype(out_dtype).itemsize
    cost = pl.CostEstimate(
        flops=2 * Mp * Kp * Np,
        transcendentals=0,
        bytes_accessed=(Mp * Kp * compute_itemsize) * gn      # x re-streamed per j
        + (Kp * Np * compute_itemsize) * gm                   # w re-streamed per i
        + Mp * Np * out_itemsize
        + (Np * 4 if bias is not None else 0),
    )
    compiler_params = pltpu.CompilerParams(
        dimension_semantics=("parallel", "parallel", "arbitrary"),
        vmem_limit_bytes=vmem_limit,
    )

    x_spec = pl.BlockSpec((tm, tk), lambda i, j, k: (i, k))
    w_spec = pl.BlockSpec((tk, tn), lambda i, j, k: (k, j))
    b_spec = pl.BlockSpec((1, tn), lambda i, j, k: (0, j))
    out_spec = pl.BlockSpec((tm, tn), lambda i, j, k: (i, j))
    out_shape = jax.ShapeDtypeStruct((Mp, Np), out_dtype)

    operands = [xp, wTp]
    in_specs = [x_spec, w_spec]
    if bias is not None:
        bp = bias.astype(jnp.float32)
        if Np != N:
            bp = jnp.pad(bp, (0, Np - N))
        operands.append(bp.reshape(1, Np))
        in_specs.append(b_spec)

    if out_is_f32:
        kernel = _fa_kernel_bias_f32out if bias is not None else _fa_kernel_nobias_f32out
        scratch = ()
    else:
        kernel = _fa_kernel_bias_acc if bias is not None else _fa_kernel_nobias_acc
        scratch = (pltpu.VMEM((tm, tn), jnp.float32),)

    out = pl.pallas_call(
        kernel,
        out_shape=out_shape,
        grid_spec=pltpu.PrefetchScalarGridSpec(
            num_scalar_prefetch=0,
            grid=grid,
            in_specs=in_specs,
            out_specs=out_spec,
            scratch_shapes=scratch,
        ),
        compiler_params=compiler_params,
        cost_estimate=cost,
    )(*operands)

    if Mp != B or Np != N:
        out = out[:B, :N]
    return out


if __name__ == "__main__":
    # Small shapes consistent with FALinear(input_features=32, output_features=64)
    batch = 8
    input_features = 32
    output_features = 64

    key = jax.random.PRNGKey(0)
    k_x, k_w, k_wfa, k_b = jax.random.split(key, 4)

    x = jax.random.normal(k_x, (batch, input_features), dtype=jnp.float32)
    weight = jax.random.normal(
        k_w, (output_features, input_features), dtype=jnp.float32) * 0.1
    weight_fa = jax.random.normal(
        k_wfa, (output_features, input_features), dtype=jnp.float32) * 0.1
    bias = jax.random.normal(k_b, (output_features,), dtype=jnp.float32) * 0.1

    out = jax.block_until_ready(fa_linear_forward(x, weight, weight_fa, bias))
    ref = x @ weight.T + bias[None, :]
    assert out.shape == (batch, output_features)
    assert jnp.allclose(out, ref, atol=1e-5, rtol=1e-5)

    # bias=None path.
    out_nb = jax.block_until_ready(fa_linear_forward(x, weight, weight_fa, None))
    assert jnp.allclose(out_nb, x @ weight.T, atol=1e-5, rtol=1e-5)

    # Non-tile-aligned larger shape (exercises balanced tiling + padding slice).
    x2 = jax.random.normal(jax.random.PRNGKey(1), (300, 200), dtype=jnp.float32)
    w2 = jax.random.normal(jax.random.PRNGKey(2), (130, 200), dtype=jnp.float32) * 0.05
    b2 = jax.random.normal(jax.random.PRNGKey(3), (130,), dtype=jnp.float32) * 0.05
    ref2 = x2 @ w2.T + b2[None, :]
    out2 = jax.block_until_ready(fa_linear_forward(x2, w2, w2, b2))
    assert jnp.allclose(out2, ref2, atol=1e-4, rtol=1e-4)

    # bf16 fast path (f32 accumulation) -- looser tolerance for input rounding.
    out_bf = jax.block_until_ready(
        fa_linear_forward(x2, w2, w2, b2, compute_dtype=jnp.bfloat16))
    assert jnp.allclose(out_bf, ref2, atol=5e-2, rtol=5e-2)

    print("KERNEL_OK")
</pallas_src>

<mosaic_0001>
module attributes {stable_mosaic.version = 11 : i64} {
  func.func @_fa_kernel_bias_f32out(%arg0: i32, %arg1: i32, %arg2: i32, %arg3: memref<8x128xf32, #tpu.memory_space<vmem>>, %arg4: memref<128x128xf32, #tpu.memory_space<vmem>>, %arg5: memref<1x128xf32, #tpu.memory_space<vmem>>, %arg6: memref<8x128xf32, #tpu.memory_space<vmem>>) attributes {dimension_semantics = [#tpu.dimension_semantics<parallel>, #tpu.dimension_semantics<parallel>, #tpu.dimension_semantics<arbitrary>], iteration_bounds = array<i64: 1, 1, 1>, scalar_prefetch = 0 : i64, scratch_operands = 0 : i64, tpu.core_type = #tpu.core_type<tc>, window_params = [{transform_indices = @transform_0, window_bounds = array<i64: 8, 128>}, {transform_indices = @transform_1, window_bounds = array<i64: 128, 128>}, {transform_indices = @transform_2, window_bounds = array<i64: 1, 128>}, {transform_indices = @transform_3, window_bounds = array<i64: 8, 128>}]} {
    %c0_i32 = arith.constant 0 : i32
    %0 = arith.cmpi eq, %arg2, %c0_i32 : i32
    %1 = arith.extui %0 : i1 to i32
    %c0_i32_0 = arith.constant 0 : i32
    %2 = arith.cmpi ne, %1, %c0_i32_0 : i32
    scf.if %2 {
      %c0_8 = arith.constant 0 : index
      %c0_9 = arith.constant 0 : index
      %9 = vector.load %arg5[%c0_8, %c0_9] : memref<1x128xf32, #tpu.memory_space<vmem>>, vector<1x128xf32>
      %10 = vector.shape_cast %9 : vector<1x128xf32> to vector<1x128xf32>
      %11 = vector.broadcast %10 : vector<1x128xf32> to vector<8x128xf32>
      %c0_10 = arith.constant 0 : index
      %c0_11 = arith.constant 0 : index
      %12 = vector.load %arg6[%c0_10, %c0_11] : memref<8x128xf32, #tpu.memory_space<vmem>>, vector<8x128xf32>
      tpu.vector_store %arg6[%c0_10, %c0_11], %11 {strides = array<i32>} : memref<8x128xf32, #tpu.memory_space<vmem>>, vector<8x128xf32>,
    } else {
    }
    %c0 = arith.constant 0 : index
    %c0_1 = arith.constant 0 : index
    %3 = vector.load %arg6[%c0, %c0_1] : memref<8x128xf32, #tpu.memory_space<vmem>>, vector<8x128xf32>
    %c0_2 = arith.constant 0 : index
    %c0_3 = arith.constant 0 : index
    %4 = vector.load %arg3[%c0_2, %c0_3] : memref<8x128xf32, #tpu.memory_space<vmem>>, vector<8x128xf32>
    %c0_4 = arith.constant 0 : index
    %c0_5 = arith.constant 0 : index
    %5 = vector.load %arg4[%c0_4, %c0_5] : memref<128x128xf32, #tpu.memory_space<vmem>>, vector<128x128xf32>
    %cst = arith.constant dense<0.000000e+00> : vector<8x128xf32>
    %6 = tpu.matmul %4, %5, %cst {dimension_numbers = #tpu.dot_dimension_numbers<[1], [0], [0], [1], [0, 0, 1, 1], [], []>} : vector<8x128xf32>, vector<128x128xf32>, vector<8x128xf32> -> vector<8x128xf32>
    %7 = arith.addf %3, %6 : vector<8x128xf32>
    %c0_6 = arith.constant 0 : index
    %c0_7 = arith.constant 0 : index
    %8 = vector.load %arg6[%c0_6, %c0_7] : memref<8x128xf32, #tpu.memory_space<vmem>>, vector<8x128xf32>
    tpu.vector_store %arg6[%c0_6, %c0_7], %7 {strides = array<i32>} : memref<8x128xf32, #tpu.memory_space<vmem>>, vector<8x128xf32>,
    return
  }
  func.func @transform_0(%arg0: i32, %arg1: i32, %arg2: i32) -> (i32, i32) {
    %c0_i32 = arith.constant 0 : i32
    return %arg0, %arg2 : i32, i32
  }
  func.func @transform_1(%arg0: i32, %arg1: i32, %arg2: i32) -> (i32, i32) {
    %c0_i32 = arith.constant 0 : i32
    return %arg2, %arg1 : i32, i32
  }
  func.func @transform_2(%arg0: i32, %arg1: i32, %arg2: i32) -> (i32, i32) {
    %c0_i32 = arith.constant 0 : i32
    %c0_i32_0 = arith.constant 0 : i32
    return %c0_i32, %arg1 : i32, i32
  }
  func.func @transform_3(%arg0: i32, %arg1: i32, %arg2: i32) -> (i32, i32) {
    %c0_i32 = arith.constant 0 : i32
    return %arg0, %arg1 : i32, i32
  }
}

</mosaic_0001>

<llo_original>
// kernel: fa_linear_forward.1
$region0: #{fa_linear_forward.1}
  #allocation0 [shape = 'u32[]', space=smem, size = 0x4, offset = 0x4, fixed_abs, tag = 'smem constant byte address 0x4 - core index']
  #allocation1 [shape = 'u32[144,128]{1,0:T(1,128)}', space=vmem, size = 0x12000, scoped, tag = 'internal scratch']
  %s0 = inlined_call_operand.vmem [shape: f32[8,128], index: 0, kind: input, shape index: {}]
  %s1 = inlined_call_operand.vmem [shape: f32[128,128], index: 1, kind: input, shape index: {}]
  %s2 = inlined_call_operand.vmem [shape: f32[1,128], index: 2, kind: input, shape index: {}]
  %s3 = inlined_call_operand.hbm [shape: f32[8,128], index: 3, kind: output, shape index: {}]
  %s4 = sld [smem:[#allocation0]]
  $region26: #{fa_linear_forward.1} parent=0
    _
  %s6 = ssub.s32 1, %s4
  %s7 = scalar_select 0, %s6, %s4
  $region1: #{fa_linear_forward.1} parent=0
    #allocation2 [shape = 'u8[4096]{0}', space=vmem, size = 0x1000, scoped, tag = 'output window, operand 0, single buffered']
    #allocation3 [shape = 's32[1]{0}', space=sflag, size = 0x4, scoped, tag = 'scoped memory for fa_linear_forward.1']
    %8 = vsyncpa [#allocation3], 0
    // Predicated region
    $region2: #{fa_linear_forward.1} parent=1 // pred_check
      _
    $region3: #{fa_linear_forward.1} parent=1 // pred_check_branch
      %10 = sbr.rel (0) target = $region5
    $region4: #{fa_linear_forward.1} parent=1 // pred_region
      _
    $region5: #{fa_linear_forward.1} parent=1 // pred_fallthru
      _
    // Predicated region
    $region6: #{fa_linear_forward.1} parent=1 // pred_check
      _
    $region7: #{fa_linear_forward.1} parent=1 // pred_check_branch
      %12 = sbr.rel (0) target = $region9
    $region8: #{fa_linear_forward.1} parent=1 // pred_region
      _
    $region9: #{fa_linear_forward.1} parent=1 // pred_fallthru
      _
    // Predicated region
    $region10: #{fa_linear_forward.1} parent=1 // pred_check
      _
    $region11: #{fa_linear_forward.1} parent=1 // pred_check_branch
      %14 = sbr.rel (0) target = $region13
    $region12: #{fa_linear_forward.1} parent=1 // pred_region
      _
    $region13: #{fa_linear_forward.1} parent=1 // pred_fallthru
      _
    %p15 = scmp.eq.s32.totalorder 0, 0
    // Predicated region
    $region14: #{fa_linear_forward.1} parent=1 // pred_check
      %p16 = pneg %p15
    $region15: #{fa_linear_forward.1} parent=1 // pred_check_branch
      %18 = sbr.rel (%p16) target = $region17
    $region16: #{fa_linear_forward.1} parent=1 // pred_region
      %v19 = vld [vmem:[%s2] sm:$0x1]
      %v21 = vlaneseq
      %v22 = vshrl.u32 %v21, 7
      %v23 = vsub.s32 0, %v22
      %v24 = vrot.slane %v19, %v23
      %26 = vst [vmem:[#allocation2] sm:$0xff] %v24
    $region17: #{fa_linear_forward.1} parent=1 // pred_fallthru
      _
    %v27 = vld [vmem:[#allocation2] sm:$0xff]
    %v28 = vld [vmem:[%s0] sm:$0xff]
    %v29 = vld [vmem:[%s1] sm:$0xff]
    %v30 = vld [vmem:[%s1 + $0x8] sm:$0xff]
    %v31 = vld [vmem:[%s1 + $0x10] sm:$0xff]
    %v32 = vld [vmem:[%s1 + $0x18] sm:$0xff]
    %v33 = vld [vmem:[%s1 + $0x20] sm:$0xff]
    %v34 = vld [vmem:[%s1 + $0x28] sm:$0xff]
    %v35 = vld [vmem:[%s1 + $0x30] sm:$0xff]
    %v36 = vld [vmem:[%s1 + $0x38] sm:$0xff]
    %v37 = vld [vmem:[%s1 + $0x40] sm:$0xff]
    %v38 = vld [vmem:[%s1 + $0x48] sm:$0xff]
    %v39 = vld [vmem:[%s1 + $0x50] sm:$0xff]
    %v40 = vld [vmem:[%s1 + $0x58] sm:$0xff]
    %v41 = vld [vmem:[%s1 + $0x60] sm:$0xff]
    %v42 = vld [vmem:[%s1 + $0x68] sm:$0xff]
    %v43 = vld [vmem:[%s1 + $0x70] sm:$0xff]
    %v44 = vld [vmem:[%s1 + $0x78] sm:$0xff]
    %45 = vmatprep.subr.mxu0 0.0
    %46 = vmatpush1.msra.mxu0 %v29
    %47 = vmatprep.subr.mxu0 0.0
    %48 = vmatpush1.msra.mxu0 %v30
    %49 = vmatprep.subr.mxu0 0.0
    %50 = vmatpush1.msra.mxu0 %v31
    %51 = vmatprep.subr.mxu0 0.0
    %52 = vmatpush1.msra.mxu0 %v32
    %53 = vmatprep.subr.mxu0 0.0
    %54 = vmatpush1.msra.mxu0 %v33
    %55 = vmatprep.subr.mxu0 0.0
    %56 = vmatpush1.msra.mxu0 %v34
    %57 = vmatprep.subr.mxu0 0.0
    %58 = vmatpush1.msra.mxu0 %v35
    %59 = vmatprep.subr.mxu0 0.0
    %60 = vmatpush1.msra.mxu0 %v36
    %61 = vmatprep.subr.mxu0 0.0
    %62 = vmatpush1.msra.mxu0 %v37
    %63 = vmatprep.subr.mxu0 0.0
    %64 = vmatpush1.msra.mxu0 %v38
    %65 = vmatprep.subr.mxu0 0.0
    %66 = vmatpush1.msra.mxu0 %v39
    %67 = vmatprep.subr.mxu0 0.0
    %68 = vmatpush1.msra.mxu0 %v40
    %69 = vmatprep.subr.mxu0 0.0
    %70 = vmatpush1.msra.mxu0 %v41
    %71 = vmatprep.subr.mxu0 0.0
    %72 = vmatpush1.msra.mxu0 %v42
    %73 = vmatprep.subr.mxu0 0.0
    %74 = vmatpush1.msra.mxu0 %v43
    %75 = vmatprep.subr.mxu0 0.0
    %76 = vmatpush1.msra.mxu0 %v44
    %77 = vmatprep.subr.mxu0 0.0
    %78 = vmatpush1.msra.mxu0 0.0
    %79 = vmatprep.subr.mxu0 0.0
    %80 = vmatpush1.msra.mxu0 0.0
    %81 = vmatprep.subr.mxu0 0.0
    %82 = vmatpush1.msra.mxu0 0.0
    %83 = vmatprep.subr.mxu0 0.0
    %84 = vmatpush1.msra.mxu0 0.0
    %85 = vmatprep.subr.mxu0 0.0
    %86 = vmatpush1.msra.mxu0 0.0
    %87 = vmatprep.subr.mxu0 0.0
    %88 = vmatpush1.msra.mxu0 0.0
    %89 = vmatprep.subr.mxu0 0.0
    %90 = vmatpush1.msra.mxu0 0.0
    %91 = vmatprep.subr.mxu0 0.0
    %92 = vmatpush1.msra.mxu0 0.0
    %93 = vmatprep.subr.mxu0 0.0
    %94 = vmatpush1.msra.mxu0 0.0
    %95 = vmatprep.subr.mxu0 0.0
    %96 = vmatpush1.msra.mxu0 0.0
    %97 = vmatprep.subr.mxu0 0.0
    %98 = vmatpush1.msra.mxu0 0.0
    %99 = vmatprep.subr.mxu0 0.0
    %100 = vmatpush1.msra.mxu0 0.0
    %101 = vmatprep.subr.mxu0 0.0
    %102 = vmatpush1.msra.mxu0 0.0
    %103 = vmatprep.subr.mxu0 0.0
    %104 = vmatpush1.msra.mxu0 0.0
    %105 = vmatprep.subr.mxu0 0.0
    %106 = vmatpush1.msra.mxu0 0.0
    %107 = vmatprep.subr.mxu0 0.0
    %108 = vmatpush1.msra.mxu0 0.0
    %109 = vmatprep.mubr.f32.mxu0 0.0
    %110 = vmatmul.mubr.f32.gmra.mrb[0].mxu0 %v28
    %v111 = vpop.f32.mrb[0].mxu0
    %v112 = vadd.f32 0.0, %v111
    %v113 = vpop.f32.mrb[0].mxu0
    %114 = vdwg.mxu0
    %v115 = vadd.f32 %v27, %v112
    %116 = vst [vmem:[#allocation2] sm:$0xff] %v115
    // Predicated region
    $region18: #{fa_linear_forward.1} parent=1 // pred_check
      _
    $region19: #{fa_linear_forward.1} parent=1 // pred_check_branch
      %118 = sbr.rel (0) target = $region21
    $region20: #{fa_linear_forward.1} parent=1 // pred_region
      %s120 = ssub.s32 128, 128
      %121 = vsyncadd [#allocation3], %s120
      %s123 = sshll.u32 [#allocation2], 4
      %s124 = int_to_ptr.vmem [resolvable:$true] %s123
      %126 = dma.vmem_to_hbm [thread:$0]  %s124, 128, %s3, [#allocation3]
    $region21: #{fa_linear_forward.1} parent=1 // pred_fallthru
      _
    // Predicated region
    $region22: #{fa_linear_forward.1} parent=1 // pred_check
      _
    $region23: #{fa_linear_forward.1} parent=1 // pred_check_branch
      %128 = sbr.rel (0) target = $region25
    $region24: #{fa_linear_forward.1} parent=1 // pred_region
      %129 = dma.done [#allocation3], 128
    $region25: #{fa_linear_forward.1} parent=1 // pred_fallthru
      _
    %130 = vsyncpa [#allocation3], 1

</llo_original>
